<compile_context>
chip_gen: v6e
topology: v6e:2x2x1
jax: 0.10.0
libtpu: 0.0.40
codegen_flags: <defaults>
</compile_context>

<pallas_src>
import functools

import jax
import jax.numpy as jnp
from jax.experimental import pallas as pl
from jax.experimental.pallas import tpu as pltpu

LANES = 128          # elements per row (lane dimension)
MAX_BLOCK_R = 512    # max rows (sublanes) per grid step: 512*128*4B = 256 KiB

# Flat-parameter layout (all f32), weights stored (in_features, out_features),
# row-major:  w[i, j] -> offset + i * out_features + j
W1_OFF, B1_OFF = 0, 4          # Linear(1,4)
W2_OFF, B2_OFF = 8, 24         # Linear(4,4)
W3_OFF, B3_OFF = 28, 44        # Linear(4,4)
W4_OFF, B4_OFF = 48, 52        # Linear(4,1)
N_PARAMS = 53


def _generator_kernel(p_ref, z_ref, o_ref):
    """Whole MLP forward on one (BLOCK_R, 128) lane-dense batch tile.

    p_ref : SMEM (N_PARAMS,) f32 -- all weights/biases as scalars.
    z_ref : VMEM (BLOCK_R, 128) f32 -- one batch element per slot.
    o_ref : VMEM (BLOCK_R, 128) f32.
    """
    x = z_ref[...]

    # ---- Linear(1, 4) + LeakyReLU(0.01) -- 4 broadcast FMAs on the VPU ----
    h = []
    for j in range(4):
        v = x * p_ref[W1_OFF + j] + p_ref[B1_OFF + j]
        h.append(jnp.where(v >= 0.0, v, 0.01 * v))

    # ---- Linear(4, 4) + Dropout(eval: identity) + Tanh --------------------
    # TODO(synk): training-mode Dropout(0.5) not implemented (eval semantics).
    def dense4_tanh(hin, w_off, b_off):
        out = []
        for j in range(4):
            v = hin[0] * p_ref[w_off + j]
            for i in range(1, 4):
                v = v + hin[i] * p_ref[w_off + i * 4 + j]
            out.append(jnp.tanh(v + p_ref[b_off + j]))
        return out

    h = dense4_tanh(h, W2_OFF, B2_OFF)
    h = dense4_tanh(h, W3_OFF, B3_OFF)

    # ---- Linear(4, 1) + Tanh ----------------------------------------------
    v = h[0] * p_ref[W4_OFF + 0]
    for i in range(1, 4):
        v = v + h[i] * p_ref[W4_OFF + i]
    o_ref[...] = jnp.tanh(v + p_ref[B4_OFF])


def _pack_params(params):
    (w1, b1), (w2, b2), (w3, b3), (w4, b4) = params
    flat = jnp.concatenate([
        w1.reshape(-1), b1.reshape(-1),
        w2.reshape(-1), b2.reshape(-1),
        w3.reshape(-1), b3.reshape(-1),
        w4.reshape(-1), b4.reshape(-1),
    ]).astype(jnp.float32)
    assert flat.shape[0] == N_PARAMS
    return flat


def _round_up(x, m):
    return ((x + m - 1) // m) * m


@jax.jit
def generator_forward(z, params):
    """z: (N, 1) float32 -> (N, 1) float32 (eval-mode dropout)."""
    n = z.shape[0]
    p_flat = _pack_params(params)

    # Lane-dense re-layout: N batch elements -> (rows, 128) slabs.
    rows = _round_up(pl.cdiv(n, LANES), 8)                       # sublane align
    # Tile rows; cap at MAX_BLOCK_R, and aim for >=2 grid steps when possible
    # so v7x's two TensorCores both get work.
    block_r = min(MAX_BLOCK_R, max(8, _round_up(pl.cdiv(rows, 2), 8)))
    rows_pad = _round_up(rows, block_r)
    grid = (rows_pad // block_r,)

    total = rows_pad * LANES
    z2d = jnp.pad(z.reshape(-1), (0, total - n)).reshape(rows_pad, LANES)

    tile_spec = pl.BlockSpec((block_r, LANES), lambda i: (i, 0))

    out_p = pl.pallas_call(
        _generator_kernel,
        out_shape=jax.ShapeDtypeStruct((rows_pad, LANES), jnp.float32),
        grid_spec=pltpu.PrefetchScalarGridSpec(
            num_scalar_prefetch=0,
            grid=grid,
            in_specs=[
                pl.BlockSpec(memory_space=pltpu.MemorySpace.SMEM),  # params
                tile_spec,                                          # z tiles
            ],
            out_specs=tile_spec,
        ),
        compiler_params=pltpu.CompilerParams(
            dimension_semantics=("parallel",)),
        cost_estimate=pl.CostEstimate(
            flops=100 * total,
            transcendentals=9 * total,
            bytes_accessed=2 * total * 4 + N_PARAMS * 4,
        ),
    )(p_flat, z2d)

    return out_p.reshape(-1)[:n].reshape(n, 1)


def init_params(key):
    """Deterministic init matching PyTorch nn.Linear default:
    U(-1/sqrt(fan_in), 1/sqrt(fan_in)) for weight and bias.
    Weights stored as (in_features, out_features)."""
    sizes = [(1, 4), (4, 4), (4, 4), (4, 1)]
    params = []
    for (fan_in, fan_out) in sizes:
        key, kw, kb = jax.random.split(key, 3)
        bound = 1.0 / (fan_in ** 0.5)
        w = jax.random.uniform(kw, (fan_in, fan_out), jnp.float32,
                               minval=-bound, maxval=bound)
        b = jax.random.uniform(kb, (fan_out,), jnp.float32,
                               minval=-bound, maxval=bound)
        params.append((w, b))
    return tuple(params)


def reference_forward(z, params):
    """Plain-JAX reference (eval-mode dropout), pure-f32 dots."""
    (w1, b1), (w2, b2), (w3, b3), (w4, b4) = params
    dot = functools.partial(jnp.dot, precision=jax.lax.Precision.HIGHEST)
    h = dot(z, w1) + b1
    h = jnp.where(h >= 0.0, h, 0.01 * h)
    h = jnp.tanh(dot(h, w2) + b2)
    h = jnp.tanh(dot(h, w3) + b3)
    return jnp.tanh(dot(h, w4) + b4)


if __name__ == "__main__":
    key = jax.random.PRNGKey(0)
    key, kz1, kz2 = jax.random.split(key, 3)
    params = init_params(key)

    # Small case (single tile).
    z_small = jax.random.normal(kz1, (8, 1), jnp.float32)
    out_small = jax.block_until_ready(generator_forward(z_small, params))
    ref_small = reference_forward(z_small, params)
    assert out_small.shape == (8, 1), out_small.shape
    assert jnp.allclose(out_small, ref_small, atol=1e-5, rtol=1e-5)

    # Larger case to exercise multiple lane-dense rows / grid steps.
    z_big = jax.random.normal(kz2, (3000, 1), jnp.float32)
    out_big = jax.block_until_ready(generator_forward(z_big, params))
    ref_big = reference_forward(z_big, params)
    assert out_big.shape == (3000, 1), out_big.shape
    assert jnp.allclose(out_big, ref_big, atol=1e-5, rtol=1e-5)

    print("KERNEL_OK")
</pallas_src>

<mosaic_0001>
module attributes {stable_mosaic.version = 11 : i64} {
  func.func @_generator_kernel(%arg0: i32, %arg1: memref<53xf32, #tpu.memory_space<smem>>, %arg2: memref<8x128xf32, #tpu.memory_space<vmem>>, %arg3: memref<8x128xf32, #tpu.memory_space<vmem>>) attributes {dimension_semantics = [#tpu.dimension_semantics<parallel>], iteration_bounds = array<i64: 1>, scalar_prefetch = 0 : i64, scratch_operands = 0 : i64, tpu.core_type = #tpu.core_type<tc>, window_params = [{transform_indices = @transform_0, window_bounds = array<i64: 53>}, {transform_indices = @transform_1, window_bounds = array<i64: 8, 128>}, {transform_indices = @transform_2, window_bounds = array<i64: 8, 128>}]} {
    %c0 = arith.constant 0 : index
    %c0_0 = arith.constant 0 : index
    %0 = vector.load %arg2[%c0, %c0_0] : memref<8x128xf32, #tpu.memory_space<vmem>>, vector<8x128xf32>
    %c0_1 = arith.constant 0 : index
    %1 = memref.load %arg1[%c0_1] : memref<53xf32, #tpu.memory_space<smem>>
    %2 = vector.broadcast %1 : f32 to vector<8x128xf32>
    %3 = arith.mulf %0, %2 : vector<8x128xf32>
    %c4 = arith.constant 4 : index
    %4 = memref.load %arg1[%c4] : memref<53xf32, #tpu.memory_space<smem>>
    %5 = vector.broadcast %4 : f32 to vector<8x128xf32>
    %6 = arith.addf %3, %5 : vector<8x128xf32>
    %cst = arith.constant 0.000000e+00 : f32
    %7 = vector.broadcast %cst : f32 to vector<8x128xf32>
    %8 = arith.cmpf oge, %6, %7 : vector<8x128xf32>
    %cst_2 = arith.constant 0.00999999977 : f32
    %9 = vector.broadcast %cst_2 : f32 to vector<8x128xf32>
    %10 = arith.mulf %9, %6 : vector<8x128xf32>
    %11 = arith.select %8, %6, %10 : vector<8x128xi1>, vector<8x128xf32>
    %c1 = arith.constant 1 : index
    %12 = memref.load %arg1[%c1] : memref<53xf32, #tpu.memory_space<smem>>
    %13 = vector.broadcast %12 : f32 to vector<8x128xf32>
    %14 = arith.mulf %0, %13 : vector<8x128xf32>
    %c5 = arith.constant 5 : index
    %15 = memref.load %arg1[%c5] : memref<53xf32, #tpu.memory_space<smem>>
    %16 = vector.broadcast %15 : f32 to vector<8x128xf32>
    %17 = arith.addf %14, %16 : vector<8x128xf32>
    %cst_3 = arith.constant 0.000000e+00 : f32
    %18 = vector.broadcast %cst_3 : f32 to vector<8x128xf32>
    %19 = arith.cmpf oge, %17, %18 : vector<8x128xf32>
    %cst_4 = arith.constant 0.00999999977 : f32
    %20 = vector.broadcast %cst_4 : f32 to vector<8x128xf32>
    %21 = arith.mulf %20, %17 : vector<8x128xf32>
    %22 = arith.select %19, %17, %21 : vector<8x128xi1>, vector<8x128xf32>
    %c2 = arith.constant 2 : index
    %23 = memref.load %arg1[%c2] : memref<53xf32, #tpu.memory_space<smem>>
    %24 = vector.broadcast %23 : f32 to vector<8x128xf32>
    %25 = arith.mulf %0, %24 : vector<8x128xf32>
    %c6 = arith.constant 6 : index
    %26 = memref.load %arg1[%c6] : memref<53xf32, #tpu.memory_space<smem>>
    %27 = vector.broadcast %26 : f32 to vector<8x128xf32>
    %28 = arith.addf %25, %27 : vector<8x128xf32>
    %cst_5 = arith.constant 0.000000e+00 : f32
    %29 = vector.broadcast %cst_5 : f32 to vector<8x128xf32>
    %30 = arith.cmpf oge, %28, %29 : vector<8x128xf32>
    %cst_6 = arith.constant 0.00999999977 : f32
    %31 = vector.broadcast %cst_6 : f32 to vector<8x128xf32>
    %32 = arith.mulf %31, %28 : vector<8x128xf32>
    %33 = arith.select %30, %28, %32 : vector<8x128xi1>, vector<8x128xf32>
    %c3 = arith.constant 3 : index
    %34 = memref.load %arg1[%c3] : memref<53xf32, #tpu.memory_space<smem>>
    %35 = vector.broadcast %34 : f32 to vector<8x128xf32>
    %36 = arith.mulf %0, %35 : vector<8x128xf32>
    %c7 = arith.constant 7 : index
    %37 = memref.load %arg1[%c7] : memref<53xf32, #tpu.memory_space<smem>>
    %38 = vector.broadcast %37 : f32 to vector<8x128xf32>
    %39 = arith.addf %36, %38 : vector<8x128xf32>
    %cst_7 = arith.constant 0.000000e+00 : f32
    %40 = vector.broadcast %cst_7 : f32 to vector<8x128xf32>
    %41 = arith.cmpf oge, %39, %40 : vector<8x128xf32>
    %cst_8 = arith.constant 0.00999999977 : f32
    %42 = vector.broadcast %cst_8 : f32 to vector<8x128xf32>
    %43 = arith.mulf %42, %39 : vector<8x128xf32>
    %44 = arith.select %41, %39, %43 : vector<8x128xi1>, vector<8x128xf32>
    %c8 = arith.constant 8 : index
    %45 = memref.load %arg1[%c8] : memref<53xf32, #tpu.memory_space<smem>>
    %46 = vector.broadcast %45 : f32 to vector<8x128xf32>
    %47 = arith.mulf %11, %46 : vector<8x128xf32>
    %c12 = arith.constant 12 : index
    %48 = memref.load %arg1[%c12] : memref<53xf32, #tpu.memory_space<smem>>
    %49 = vector.broadcast %48 : f32 to vector<8x128xf32>
    %50 = arith.mulf %22, %49 : vector<8x128xf32>
    %51 = arith.addf %47, %50 : vector<8x128xf32>
    %c16 = arith.constant 16 : index
    %52 = memref.load %arg1[%c16] : memref<53xf32, #tpu.memory_space<smem>>
    %53 = vector.broadcast %52 : f32 to vector<8x128xf32>
    %54 = arith.mulf %33, %53 : vector<8x128xf32>
    %55 = arith.addf %51, %54 : vector<8x128xf32>
    %c20 = arith.constant 20 : index
    %56 = memref.load %arg1[%c20] : memref<53xf32, #tpu.memory_space<smem>>
    %57 = vector.broadcast %56 : f32 to vector<8x128xf32>
    %58 = arith.mulf %44, %57 : vector<8x128xf32>
    %59 = arith.addf %55, %58 : vector<8x128xf32>
    %c24 = arith.constant 24 : index
    %60 = memref.load %arg1[%c24] : memref<53xf32, #tpu.memory_space<smem>>
    %61 = vector.broadcast %60 : f32 to vector<8x128xf32>
    %62 = arith.addf %59, %61 : vector<8x128xf32>
    %63 = math.tanh %62 : vector<8x128xf32>
    %c9 = arith.constant 9 : index
    %64 = memref.load %arg1[%c9] : memref<53xf32, #tpu.memory_space<smem>>
    %65 = vector.broadcast %64 : f32 to vector<8x128xf32>
    %66 = arith.mulf %11, %65 : vector<8x128xf32>
    %c13 = arith.constant 13 : index
    %67 = memref.load %arg1[%c13] : memref<53xf32, #tpu.memory_space<smem>>
    %68 = vector.broadcast %67 : f32 to vector<8x128xf32>
    %69 = arith.mulf %22, %68 : vector<8x128xf32>
    %70 = arith.addf %66, %69 : vector<8x128xf32>
    %c17 = arith.constant 17 : index
    %71 = memref.load %arg1[%c17] : memref<53xf32, #tpu.memory_space<smem>>
    %72 = vector.broadcast %71 : f32 to vector<8x128xf32>
    %73 = arith.mulf %33, %72 : vector<8x128xf32>
    %74 = arith.addf %70, %73 : vector<8x128xf32>
    %c21 = arith.constant 21 : index
    %75 = memref.load %arg1[%c21] : memref<53xf32, #tpu.memory_space<smem>>
    %76 = vector.broadcast %75 : f32 to vector<8x128xf32>
    %77 = arith.mulf %44, %76 : vector<8x128xf32>
    %78 = arith.addf %74, %77 : vector<8x128xf32>
    %c25 = arith.constant 25 : index
    %79 = memref.load %arg1[%c25] : memref<53xf32, #tpu.memory_space<smem>>
    %80 = vector.broadcast %79 : f32 to vector<8x128xf32>
    %81 = arith.addf %78, %80 : vector<8x128xf32>
    %82 = math.tanh %81 : vector<8x128xf32>
    %c10 = arith.constant 10 : index
    %83 = memref.load %arg1[%c10] : memref<53xf32, #tpu.memory_space<smem>>
    %84 = vector.broadcast %83 : f32 to vector<8x128xf32>
    %85 = arith.mulf %11, %84 : vector<8x128xf32>
    %c14 = arith.constant 14 : index
    %86 = memref.load %arg1[%c14] : memref<53xf32, #tpu.memory_space<smem>>
    %87 = vector.broadcast %86 : f32 to vector<8x128xf32>
    %88 = arith.mulf %22, %87 : vector<8x128xf32>
    %89 = arith.addf %85, %88 : vector<8x128xf32>
    %c18 = arith.constant 18 : index
    %90 = memref.load %arg1[%c18] : memref<53xf32, #tpu.memory_space<smem>>
    %91 = vector.broadcast %90 : f32 to vector<8x128xf32>
    %92 = arith.mulf %33, %91 : vector<8x128xf32>
    %93 = arith.addf %89, %92 : vector<8x128xf32>
    %c22 = arith.constant 22 : index
    %94 = memref.load %arg1[%c22] : memref<53xf32, #tpu.memory_space<smem>>
    %95 = vector.broadcast %94 : f32 to vector<8x128xf32>
    %96 = arith.mulf %44, %95 : vector<8x128xf32>
    %97 = arith.addf %93, %96 : vector<8x128xf32>
    %c26 = arith.constant 26 : index
    %98 = memref.load %arg1[%c26] : memref<53xf32, #tpu.memory_space<smem>>
    %99 = vector.broadcast %98 : f32 to vector<8x128xf32>
    %100 = arith.addf %97, %99 : vector<8x128xf32>
    %101 = math.tanh %100 : vector<8x128xf32>
    %c11 = arith.constant 11 : index
    %102 = memref.load %arg1[%c11] : memref<53xf32, #tpu.memory_space<smem>>
    %103 = vector.broadcast %102 : f32 to vector<8x128xf32>
    %104 = arith.mulf %11, %103 : vector<8x128xf32>
    %c15 = arith.constant 15 : index
    %105 = memref.load %arg1[%c15] : memref<53xf32, #tpu.memory_space<smem>>
    %106 = vector.broadcast %105 : f32 to vector<8x128xf32>
    %107 = arith.mulf %22, %106 : vector<8x128xf32>
    %108 = arith.addf %104, %107 : vector<8x128xf32>
    %c19 = arith.constant 19 : index
    %109 = memref.load %arg1[%c19] : memref<53xf32, #tpu.memory_space<smem>>
    %110 = vector.broadcast %109 : f32 to vector<8x128xf32>
    %111 = arith.mulf %33, %110 : vector<8x128xf32>
    %112 = arith.addf %108, %111 : vector<8x128xf32>
    %c23 = arith.constant 23 : index
    %113 = memref.load %arg1[%c23] : memref<53xf32, #tpu.memory_space<smem>>
    %114 = vector.broadcast %113 : f32 to vector<8x128xf32>
    %115 = arith.mulf %44, %114 : vector<8x128xf32>
    %116 = arith.addf %112, %115 : vector<8x128xf32>
    %c27 = arith.constant 27 : index
    %117 = memref.load %arg1[%c27] : memref<53xf32, #tpu.memory_space<smem>>
    %118 = vector.broadcast %117 : f32 to vector<8x128xf32>
    %119 = arith.addf %116, %118 : vector<8x128xf32>
    %120 = math.tanh %119 : vector<8x128xf32>
    %c28 = arith.constant 28 : index
    %121 = memref.load %arg1[%c28] : memref<53xf32, #tpu.memory_space<smem>>
    %122 = vector.broadcast %121 : f32 to vector<8x128xf32>
    %123 = arith.mulf %63, %122 : vector<8x128xf32>
    %c32 = arith.constant 32 : index
    %124 = memref.load %arg1[%c32] : memref<53xf32, #tpu.memory_space<smem>>
    %125 = vector.broadcast %124 : f32 to vector<8x128xf32>
    %126 = arith.mulf %82, %125 : vector<8x128xf32>
    %127 = arith.addf %123, %126 : vector<8x128xf32>
    %c36 = arith.constant 36 : index
    %128 = memref.load %arg1[%c36] : memref<53xf32, #tpu.memory_space<smem>>
    %129 = vector.broadcast %128 : f32 to vector<8x128xf32>
    %130 = arith.mulf %101, %129 : vector<8x128xf32>
    %131 = arith.addf %127, %130 : vector<8x128xf32>
    %c40 = arith.constant 40 : index
    %132 = memref.load %arg1[%c40] : memref<53xf32, #tpu.memory_space<smem>>
    %133 = vector.broadcast %132 : f32 to vector<8x128xf32>
    %134 = arith.mulf %120, %133 : vector<8x128xf32>
    %135 = arith.addf %131, %134 : vector<8x128xf32>
    %c44 = arith.constant 44 : index
    %136 = memref.load %arg1[%c44] : memref<53xf32, #tpu.memory_space<smem>>
    %137 = vector.broadcast %136 : f32 to vector<8x128xf32>
    %138 = arith.addf %135, %137 : vector<8x128xf32>
    %139 = math.tanh %138 : vector<8x128xf32>
    %c29 = arith.constant 29 : index
    %140 = memref.load %arg1[%c29] : memref<53xf32, #tpu.memory_space<smem>>
    %141 = vector.broadcast %140 : f32 to vector<8x128xf32>
    %142 = arith.mulf %63, %141 : vector<8x128xf32>
    %c33 = arith.constant 33 : index
    %143 = memref.load %arg1[%c33] : memref<53xf32, #tpu.memory_space<smem>>
    %144 = vector.broadcast %143 : f32 to vector<8x128xf32>
    %145 = arith.mulf %82, %144 : vector<8x128xf32>
    %146 = arith.addf %142, %145 : vector<8x128xf32>
    %c37 = arith.constant 37 : index
    %147 = memref.load %arg1[%c37] : memref<53xf32, #tpu.memory_space<smem>>
    %148 = vector.broadcast %147 : f32 to vector<8x128xf32>
    %149 = arith.mulf %101, %148 : vector<8x128xf32>
    %150 = arith.addf %146, %149 : vector<8x128xf32>
    %c41 = arith.constant 41 : index
    %151 = memref.load %arg1[%c41] : memref<53xf32, #tpu.memory_space<smem>>
    %152 = vector.broadcast %151 : f32 to vector<8x128xf32>
    %153 = arith.mulf %120, %152 : vector<8x128xf32>
    %154 = arith.addf %150, %153 : vector<8x128xf32>
    %c45 = arith.constant 45 : index
    %155 = memref.load %arg1[%c45] : memref<53xf32, #tpu.memory_space<smem>>
    %156 = vector.broadcast %155 : f32 to vector<8x128xf32>
    %157 = arith.addf %154, %156 : vector<8x128xf32>
    %158 = math.tanh %157 : vector<8x128xf32>
    %c30 = arith.constant 30 : index
    %159 = memref.load %arg1[%c30] : memref<53xf32, #tpu.memory_space<smem>>
    %160 = vector.broadcast %159 : f32 to vector<8x128xf32>
    %161 = arith.mulf %63, %160 : vector<8x128xf32>
    %c34 = arith.constant 34 : index
    %162 = memref.load %arg1[%c34] : memref<53xf32, #tpu.memory_space<smem>>
    %163 = vector.broadcast %162 : f32 to vector<8x128xf32>
    %164 = arith.mulf %82, %163 : vector<8x128xf32>
    %165 = arith.addf %161, %164 : vector<8x128xf32>
    %c38 = arith.constant 38 : index
    %166 = memref.load %arg1[%c38] : memref<53xf32, #tpu.memory_space<smem>>
    %167 = vector.broadcast %166 : f32 to vector<8x128xf32>
    %168 = arith.mulf %101, %167 : vector<8x128xf32>
    %169 = arith.addf %165, %168 : vector<8x128xf32>
    %c42 = arith.constant 42 : index
    %170 = memref.load %arg1[%c42] : memref<53xf32, #tpu.memory_space<smem>>
    %171 = vector.broadcast %170 : f32 to vector<8x128xf32>
    %172 = arith.mulf %120, %171 : vector<8x128xf32>
    %173 = arith.addf %169, %172 : vector<8x128xf32>
    %c46 = arith.constant 46 : index
    %174 = memref.load %arg1[%c46] : memref<53xf32, #tpu.memory_space<smem>>
    %175 = vector.broadcast %174 : f32 to vector<8x128xf32>
    %176 = arith.addf %173, %175 : vector<8x128xf32>
    %177 = math.tanh %176 : vector<8x128xf32>
    %c31 = arith.constant 31 : index
    %178 = memref.load %arg1[%c31] : memref<53xf32, #tpu.memory_space<smem>>
    %179 = vector.broadcast %178 : f32 to vector<8x128xf32>
    %180 = arith.mulf %63, %179 : vector<8x128xf32>
    %c35 = arith.constant 35 : index
    %181 = memref.load %arg1[%c35] : memref<53xf32, #tpu.memory_space<smem>>
    %182 = vector.broadcast %181 : f32 to vector<8x128xf32>
    %183 = arith.mulf %82, %182 : vector<8x128xf32>
    %184 = arith.addf %180, %183 : vector<8x128xf32>
    %c39 = arith.constant 39 : index
    %185 = memref.load %arg1[%c39] : memref<53xf32, #tpu.memory_space<smem>>
    %186 = vector.broadcast %185 : f32 to vector<8x128xf32>
    %187 = arith.mulf %101, %186 : vector<8x128xf32>
    %188 = arith.addf %184, %187 : vector<8x128xf32>
    %c43 = arith.constant 43 : index
    %189 = memref.load %arg1[%c43] : memref<53xf32, #tpu.memory_space<smem>>
    %190 = vector.broadcast %189 : f32 to vector<8x128xf32>
    %191 = arith.mulf %120, %190 : vector<8x128xf32>
    %192 = arith.addf %188, %191 : vector<8x128xf32>
    %c47 = arith.constant 47 : index
    %193 = memref.load %arg1[%c47] : memref<53xf32, #tpu.memory_space<smem>>
    %194 = vector.broadcast %193 : f32 to vector<8x128xf32>
    %195 = arith.addf %192, %194 : vector<8x128xf32>
    %196 = math.tanh %195 : vector<8x128xf32>
    %c48 = arith.constant 48 : index
    %197 = memref.load %arg1[%c48] : memref<53xf32, #tpu.memory_space<smem>>
    %198 = vector.broadcast %197 : f32 to vector<8x128xf32>
    %199 = arith.mulf %139, %198 : vector<8x128xf32>
    %c49 = arith.constant 49 : index
    %200 = memref.load %arg1[%c49] : memref<53xf32, #tpu.memory_space<smem>>
    %201 = vector.broadcast %200 : f32 to vector<8x128xf32>
    %202 = arith.mulf %158, %201 : vector<8x128xf32>
    %203 = arith.addf %199, %202 : vector<8x128xf32>
    %c50 = arith.constant 50 : index
    %204 = memref.load %arg1[%c50] : memref<53xf32, #tpu.memory_space<smem>>
    %205 = vector.broadcast %204 : f32 to vector<8x128xf32>
    %206 = arith.mulf %177, %205 : vector<8x128xf32>
    %207 = arith.addf %203, %206 : vector<8x128xf32>
    %c51 = arith.constant 51 : index
    %208 = memref.load %arg1[%c51] : memref<53xf32, #tpu.memory_space<smem>>
    %209 = vector.broadcast %208 : f32 to vector<8x128xf32>
    %210 = arith.mulf %196, %209 : vector<8x128xf32>
    %211 = arith.addf %207, %210 : vector<8x128xf32>
    %c52 = arith.constant 52 : index
    %212 = memref.load %arg1[%c52] : memref<53xf32, #tpu.memory_space<smem>>
    %213 = vector.broadcast %212 : f32 to vector<8x128xf32>
    %214 = arith.addf %211, %213 : vector<8x128xf32>
    %215 = math.tanh %214 : vector<8x128xf32>
    %c0_9 = arith.constant 0 : index
    %c0_10 = arith.constant 0 : index
    %216 = vector.load %arg3[%c0_9, %c0_10] : memref<8x128xf32, #tpu.memory_space<vmem>>, vector<8x128xf32>
    tpu.vector_store %arg3[%c0_9, %c0_10], %215 {strides = array<i32>} : memref<8x128xf32, #tpu.memory_space<vmem>>, vector<8x128xf32>,
    return
  }
  func.func @transform_0(%arg0: i32) -> i32 {
    %c0_i32 = arith.constant 0 : i32
    %c0_i32_0 = arith.constant 0 : i32
    return %c0_i32 : i32
  }
  func.func @transform_1(%arg0: i32) -> (i32, i32) {
    %c0_i32 = arith.constant 0 : i32
    %c0_i32_0 = arith.constant 0 : i32
    return %arg0, %c0_i32 : i32, i32
  }
  func.func @transform_2(%arg0: i32) -> (i32, i32) {
    %c0_i32 = arith.constant 0 : i32
    %c0_i32_0 = arith.constant 0 : i32
    return %arg0, %c0_i32 : i32, i32
  }
}

</mosaic_0001>

<llo_original>
// kernel: generator_forward.1
$region0: #{generator_forward.1}
  #allocation0 [shape = 'u32[]', space=smem, size = 0x4, offset = 0x4, fixed_abs, tag = 'smem constant byte address 0x4 - core index']
  #allocation1 [shape = 'u32[144,128]{1,0:T(1,128)}', space=vmem, size = 0x12000, scoped, tag = 'internal scratch']
  %s0 = inlined_call_operand.vmem [shape: f32[53], index: 0, kind: input, shape index: {}]
  %s1 = inlined_call_operand.vmem [shape: f32[8,128], index: 1, kind: input, shape index: {}]
  %s2 = inlined_call_operand.vmem [shape: f32[8,128], index: 2, kind: output, shape index: {}]
  %s3 = sld [smem:[#allocation0]]
  $region22: #{generator_forward.1} parent=0
    _
  %s5 = ssub.s32 1, %s3
  %s6 = scalar_select 0, %s5, %s3
  $region1: #{generator_forward.1} parent=0
    #allocation2 [shape = 'u8[512]{0}', space=smem, size = 0x200, scoped, tag = 'input window, operand 0, single buffered']
    #allocation3 [shape = 's32[1]{0}', space=sflag, size = 0x4, scoped, tag = 'scoped memory for generator_forward.1']
    %7 = vsyncpa [#allocation3], 0
    // Predicated region
    $region2: #{generator_forward.1} parent=1 // pred_check
      _
    $region3: #{generator_forward.1} parent=1 // pred_check_branch
      %9 = sbr.rel (0) target = $region5
    $region4: #{generator_forward.1} parent=1 // pred_region
      %s11 = ssub.s32 16, 16
      %12 = vsyncadd [#allocation3], %s11
      %s14 = sshll.u32 %s0, 4
      %s15 = int_to_ptr.vmem [resolvable:$true] %s14
      %17 = dma.vmem_to_smem %s15, 16, [#allocation2], [#allocation3]
    $region5: #{generator_forward.1} parent=1 // pred_fallthru
      _
    // Predicated region
    $region6: #{generator_forward.1} parent=1 // pred_check
      _
    $region7: #{generator_forward.1} parent=1 // pred_check_branch
      %19 = sbr.rel (0) target = $region9
    $region8: #{generator_forward.1} parent=1 // pred_region
      _
    $region9: #{generator_forward.1} parent=1 // pred_fallthru
      _
    // Predicated region
    $region10: #{generator_forward.1} parent=1 // pred_check
      _
    $region11: #{generator_forward.1} parent=1 // pred_check_branch
      %21 = sbr.rel (0) target = $region13
    $region12: #{generator_forward.1} parent=1 // pred_region
      %22 = dma.done [#allocation3], 16
    $region13: #{generator_forward.1} parent=1 // pred_fallthru
      _
    %23 = sfence
    %v24 = vld [vmem:[%s1] sm:$0xff]
    %s25 = sld [smem:[#allocation2]]
    %v26 = vstv %s25
    %v27 = vmul.f32 %v24, %v26
    %s28 = sld [smem:[#allocation2 + $0x4]]
    %v29 = vstv %s28
    %v30 = vadd.f32 %v27, %v29
    %vm31 = vcmp.ge.f32.partialorder %v30, 0.0
    %v32 = vmul.f32 %v30, 0.01
    %v33 = vsel %vm31, %v30, %v32
    %s34 = sld [smem:[#allocation2 + $0x1]]
    %v35 = vstv %s34
    %v36 = vmul.f32 %v24, %v35
    %s37 = sld [smem:[#allocation2 + $0x5]]
    %v38 = vstv %s37
    %v39 = vadd.f32 %v36, %v38
    %vm40 = vcmp.ge.f32.partialorder %v39, 0.0
    %v41 = vmul.f32 %v39, 0.01
    %v42 = vsel %vm40, %v39, %v41
    %s43 = sld [smem:[#allocation2 + $0x2]]
    %v44 = vstv %s43
    %v45 = vmul.f32 %v24, %v44
    %s46 = sld [smem:[#allocation2 + $0x6]]
    %v47 = vstv %s46
    %v48 = vadd.f32 %v45, %v47
    %vm49 = vcmp.ge.f32.partialorder %v48, 0.0
    %v50 = vmul.f32 %v48, 0.01
    %v51 = vsel %vm49, %v48, %v50
    %s52 = sld [smem:[#allocation2 + $0x3]]
    %v53 = vstv %s52
    %v54 = vmul.f32 %v24, %v53
    %s55 = sld [smem:[#allocation2 + $0x7]]
    %v56 = vstv %s55
    %v57 = vadd.f32 %v54, %v56
    %vm58 = vcmp.ge.f32.partialorder %v57, 0.0
    %v59 = vmul.f32 %v57, 0.01
    %v60 = vsel %vm58, %v57, %v59
    %s61 = sld [smem:[#allocation2 + $0x8]]
    %v62 = vstv %s61
    %v63 = vmul.f32 %v33, %v62
    %s64 = sld [smem:[#allocation2 + $0xc]]
    %v65 = vstv %s64
    %v66 = vmul.f32 %v42, %v65
    %v67 = vadd.f32 %v63, %v66
    %s68 = sld [smem:[#allocation2 + $0x10]]
    %v69 = vstv %s68
    %v70 = vmul.f32 %v51, %v69
    %v71 = vadd.f32 %v67, %v70
    %s72 = sld [smem:[#allocation2 + $0x14]]
    %v73 = vstv %s72
    %v74 = vmul.f32 %v60, %v73
    %v75 = vadd.f32 %v71, %v74
    %s76 = sld [smem:[#allocation2 + $0x18]]
    %v77 = vstv %s76
    %v78 = vadd.f32 %v75, %v77
    %v79 = vtanh.pop %v78
    %s80 = sld [smem:[#allocation2 + $0x9]]
    %v81 = vstv %s80
    %v82 = vmul.f32 %v33, %v81
    %s83 = sld [smem:[#allocation2 + $0xd]]
    %v84 = vstv %s83
    %v85 = vmul.f32 %v42, %v84
    %v86 = vadd.f32 %v82, %v85
    %s87 = sld [smem:[#allocation2 + $0x11]]
    %v88 = vstv %s87
    %v89 = vmul.f32 %v51, %v88
    %v90 = vadd.f32 %v86, %v89
    %s91 = sld [smem:[#allocation2 + $0x15]]
    %v92 = vstv %s91
    %v93 = vmul.f32 %v60, %v92
    %v94 = vadd.f32 %v90, %v93
    %s95 = sld [smem:[#allocation2 + $0x19]]
    %v96 = vstv %s95
    %v97 = vadd.f32 %v94, %v96
    %v98 = vtanh.pop %v97
    %s99 = sld [smem:[#allocation2 + $0xa]]
    %v100 = vstv %s99
    %v101 = vmul.f32 %v33, %v100
    %s102 = sld [smem:[#allocation2 + $0xe]]
    %v103 = vstv %s102
    %v104 = vmul.f32 %v42, %v103
    %v105 = vadd.f32 %v101, %v104
    %s106 = sld [smem:[#allocation2 + $0x12]]
    %v107 = vstv %s106
    %v108 = vmul.f32 %v51, %v107
    %v109 = vadd.f32 %v105, %v108
    %s110 = sld [smem:[#allocation2 + $0x16]]
    %v111 = vstv %s110
    %v112 = vmul.f32 %v60, %v111
    %v113 = vadd.f32 %v109, %v112
    %s114 = sld [smem:[#allocation2 + $0x1a]]
    %v115 = vstv %s114
    %v116 = vadd.f32 %v113, %v115
    %v117 = vtanh.pop %v116
    %s118 = sld [smem:[#allocation2 + $0xb]]
    %v119 = vstv %s118
    %v120 = vmul.f32 %v33, %v119
    %s121 = sld [smem:[#allocation2 + $0xf]]
    %v122 = vstv %s121
    %v123 = vmul.f32 %v42, %v122
    %v124 = vadd.f32 %v120, %v123
    %s125 = sld [smem:[#allocation2 + $0x13]]
    %v126 = vstv %s125
    %v127 = vmul.f32 %v51, %v126
    %v128 = vadd.f32 %v124, %v127
    %s129 = sld [smem:[#allocation2 + $0x17]]
    %v130 = vstv %s129
    %v131 = vmul.f32 %v60, %v130
    %v132 = vadd.f32 %v128, %v131
    %s133 = sld [smem:[#allocation2 + $0x1b]]
    %v134 = vstv %s133
    %v135 = vadd.f32 %v132, %v134
    %v136 = vtanh.pop %v135
    %s137 = sld [smem:[#allocation2 + $0x1c]]
    %v138 = vstv %s137
    %v139 = vmul.f32 %v79, %v138
    %s140 = sld [smem:[#allocation2 + $0x20]]
    %v141 = vstv %s140
    %v142 = vmul.f32 %v98, %v141
    %v143 = vadd.f32 %v139, %v142
    %s144 = sld [smem:[#allocation2 + $0x24]]
    %v145 = vstv %s144
    %v146 = vmul.f32 %v117, %v145
    %v147 = vadd.f32 %v143, %v146
    %s148 = sld [smem:[#allocation2 + $0x28]]
    %v149 = vstv %s148
    %v150 = vmul.f32 %v136, %v149
    %v151 = vadd.f32 %v147, %v150
    %s152 = sld [smem:[#allocation2 + $0x2c]]
    %v153 = vstv %s152
    %v154 = vadd.f32 %v151, %v153
    %v155 = vtanh.pop %v154
    %s156 = sld [smem:[#allocation2 + $0x1d]]
    %v157 = vstv %s156
    %v158 = vmul.f32 %v79, %v157
    %s159 = sld [smem:[#allocation2 + $0x21]]
    %v160 = vstv %s159
    %v161 = vmul.f32 %v98, %v160
    %v162 = vadd.f32 %v158, %v161
    %s163 = sld [smem:[#allocation2 + $0x25]]
    %v164 = vstv %s163
    %v165 = vmul.f32 %v117, %v164
    %v166 = vadd.f32 %v162, %v165
    %s167 = sld [smem:[#allocation2 + $0x29]]
    %v168 = vstv %s167
    %v169 = vmul.f32 %v136, %v168
    %v170 = vadd.f32 %v166, %v169
    %s171 = sld [smem:[#allocation2 + $0x2d]]
    %v172 = vstv %s171
    %v173 = vadd.f32 %v170, %v172
    %v174 = vtanh.pop %v173
    %s175 = sld [smem:[#allocation2 + $0x1e]]
    %v176 = vstv %s175
    %v177 = vmul.f32 %v79, %v176
    %s178 = sld [smem:[#allocation2 + $0x22]]
    %v179 = vstv %s178
    %v180 = vmul.f32 %v98, %v179
    %v181 = vadd.f32 %v177, %v180
    %s182 = sld [smem:[#allocation2 + $0x26]]
    %v183 = vstv %s182
    %v184 = vmul.f32 %v117, %v183
    %v185 = vadd.f32 %v181, %v184
    %s186 = sld [smem:[#allocation2 + $0x2a]]
    %v187 = vstv %s186
    %v188 = vmul.f32 %v136, %v187
    %v189 = vadd.f32 %v185, %v188
    %s190 = sld [smem:[#allocation2 + $0x2e]]
    %v191 = vstv %s190
    %v192 = vadd.f32 %v189, %v191
    %v193 = vtanh.pop %v192
    %s194 = sld [smem:[#allocation2 + $0x1f]]
    %v195 = vstv %s194
    %v196 = vmul.f32 %v79, %v195
    %s197 = sld [smem:[#allocation2 + $0x23]]
    %v198 = vstv %s197
    %v199 = vmul.f32 %v98, %v198
    %v200 = vadd.f32 %v196, %v199
    %s201 = sld [smem:[#allocation2 + $0x27]]
    %v202 = vstv %s201
    %v203 = vmul.f32 %v117, %v202
    %v204 = vadd.f32 %v200, %v203
    %s205 = sld [smem:[#allocation2 + $0x2b]]
    %v206 = vstv %s205
    %v207 = vmul.f32 %v136, %v206
    %v208 = vadd.f32 %v204, %v207
    %s209 = sld [smem:[#allocation2 + $0x2f]]
    %v210 = vstv %s209
    %v211 = vadd.f32 %v208, %v210
    %v212 = vtanh.pop %v211
    %s213 = sld [smem:[#allocation2 + $0x30]]
    %v214 = vstv %s213
    %v215 = vmul.f32 %v155, %v214
    %s216 = sld [smem:[#allocation2 + $0x31]]
    %v217 = vstv %s216
    %v218 = vmul.f32 %v174, %v217
    %v219 = vadd.f32 %v215, %v218
    %s220 = sld [smem:[#allocation2 + $0x32]]
    %v221 = vstv %s220
    %v222 = vmul.f32 %v193, %v221
    %v223 = vadd.f32 %v219, %v222
    %s224 = sld [smem:[#allocation2 + $0x33]]
    %v225 = vstv %s224
    %v226 = vmul.f32 %v212, %v225
    %v227 = vadd.f32 %v223, %v226
    %s228 = sld [smem:[#allocation2 + $0x34]]
    %v229 = vstv %s228
    %v230 = vadd.f32 %v227, %v229
    %v231 = vtanh.pop %v230
    %232 = vst [vmem:[%s2] sm:$0xff] %v231
    // Predicated region
    $region14: #{generator_forward.1} parent=1 // pred_check
      _
    $region15: #{generator_forward.1} parent=1 // pred_check_branch
      %234 = sbr.rel (0) target = $region17
    $region16: #{generator_forward.1} parent=1 // pred_region
      _
    $region17: #{generator_forward.1} parent=1 // pred_fallthru
      _
    // Predicated region
    $region18: #{generator_forward.1} parent=1 // pred_check
      _
    $region19: #{generator_forward.1} parent=1 // pred_check_branch
      %236 = sbr.rel (0) target = $region21
    $region20: #{generator_forward.1} parent=1 // pred_region
      _
    $region21: #{generator_forward.1} parent=1 // pred_fallthru
      _
    %237 = vsyncpa [#allocation3], 1

</llo_original>
